<compile_context>
chip_gen: v6e
topology: v6e:2x2x1
jax: 0.10.0
libtpu: 0.0.40
codegen_flags: <defaults>
</compile_context>

<pallas_src>
import numpy as np
import jax
import jax.numpy as jnp
from jax.experimental import pallas as pl
from jax.experimental.pallas import tpu as pltpu


# 256 sublanes * 128 lanes = 32768 cameras per grid block (~3 MiB VMEM/block).
_SUBLANE_TILE_MAX = 256


def _pose_kernel(r_ref, t_ref, out_ref):
    """Rodrigues exp + [R|t; 0 0 0 1] on dense (S_tile, 128) camera planes.

    r_ref, t_ref : (3, S_tile, 128)  float32 component planes (x, y, z)
    out_ref      : (16, S_tile, 128) float32 row-major 4x4 entries per camera
    Camera index within the block = sublane*128 + lane.
    """
    rx, ry, rz = r_ref[0], r_ref[1], r_ref[2]
    tx, ty, tz = t_ref[0], t_ref[1], t_ref[2]

    rx2, ry2, rz2 = rx * rx, ry * ry, rz * rz
    norm = jnp.sqrt(rx2 + ry2 + rz2) + 1e-15
    # Exact reciprocal: the zero-rotation case (camera 0, default init) relies
    # on sin(1e-15)/1e-15 == 1 and (1 - cos(1e-15)) == 0 to yield R = I.
    inv = 1.0 / norm
    a = jnp.sin(norm) * inv                    # sin(|r|) / |r|
    b = (1.0 - jnp.cos(norm)) * (inv * inv)    # (1 - cos(|r|)) / |r|^2

    # K = skew(r); K @ K expanded analytically (VPU-only, no MXU padding waste).
    b_rxry = b * (rx * ry)
    b_rxrz = b * (rx * rz)
    b_ryrz = b * (ry * rz)
    arx, ary, arz = a * rx, a * ry, a * rz

    # Sixteen dense, unmasked full-plane stores (row-major 4x4 per camera).
    out_ref[0] = 1.0 - b * (ry2 + rz2)    # R00
    out_ref[1] = b_rxry - arz             # R01
    out_ref[2] = b_rxrz + ary             # R02
    out_ref[3] = tx
    out_ref[4] = b_rxry + arz             # R10
    out_ref[5] = 1.0 - b * (rx2 + rz2)    # R11
    out_ref[6] = b_ryrz - arx             # R12
    out_ref[7] = ty
    out_ref[8] = b_rxrz - ary             # R20
    out_ref[9] = b_ryrz + arx             # R21
    out_ref[10] = 1.0 - b * (rx2 + ry2)   # R22
    out_ref[11] = tz
    zeros = jnp.zeros_like(rx)
    out_ref[12] = zeros
    out_ref[13] = zeros
    out_ref[14] = zeros
    out_ref[15] = jnp.ones_like(rx)


def _plane_params(n):
    """Sublane tiling for n cameras -> (s_tile, s_pad), both multiples of 8."""
    rows = pl.cdiv(n, 128)          # sublane rows needed (128 cameras per row)
    rows8 = 8 * pl.cdiv(rows, 8)    # pad rows to a multiple of 8
    s_tile = min(_SUBLANE_TILE_MAX, rows8)
    # v7x megacore: when there is enough work, keep >= 2 grid blocks so the
    # "parallel" grid axis actually shards across both TensorCores.
    if rows8 >= 16:
        half = 8 * pl.cdiv(pl.cdiv(rows8, 2), 8)
        s_tile = min(s_tile, half)
    s_pad = s_tile * pl.cdiv(rows8, s_tile)
    return s_tile, s_pad


@jax.jit
def make_c2w_planes(r, t):
    """r, t: (N, 3) float32 -> (16, S_pad, 128) float32 pose-entry planes.

    Camera i lives at [:, i // 128, i % 128]; entries are the row-major 4x4.
    Includes the forward() camera-0 zeroing.
    """
    n = r.shape[0]
    s_tile, s_pad = _plane_params(n)
    n_pad = s_pad * 128

    # forward() zeroes camera 0 of r / t before indexing (self.r.data[0] = 0).
    r = r.astype(jnp.float32).at[0].set(0.0)
    t = t.astype(jnp.float32).at[0].set(0.0)

    def repack(x):  # (N, 3) -> (3, s_pad, 128)
        xt = jnp.zeros((3, n_pad), jnp.float32).at[:, :n].set(x.T)
        return xt.reshape(3, s_pad, 128)

    return pl.pallas_call(
        _pose_kernel,
        out_shape=jax.ShapeDtypeStruct((16, s_pad, 128), jnp.float32),
        grid=(s_pad // s_tile,),
        in_specs=[pl.BlockSpec((3, s_tile, 128), lambda i: (0, i, 0)),
                  pl.BlockSpec((3, s_tile, 128), lambda i: (0, i, 0))],
        out_specs=pl.BlockSpec((16, s_tile, 128), lambda i: (0, i, 0)),
        compiler_params=pltpu.CompilerParams(
            dimension_semantics=("parallel",)),
    )(repack(r), repack(t))


class LearnPose:
    """JAX/Pallas port of OccNet LearnPose (forward pass only)."""

    def __init__(self, num_cams, learn_R=True, learn_t=True, cfg=None,
                 init_c2w=None, key=jax.random.PRNGKey(0)):
        self.num_cams = num_cams
        self.init_c2w = init_c2w
        # PyTorch initializes r/t to zeros; use small deterministic random
        # values so the test exercises non-trivial Rodrigues math.
        kr, kt = jax.random.split(key)
        self.r = (0.1 * jax.random.normal(kr, (num_cams, 3))).astype(jnp.float32)
        self.t = (0.5 * jax.random.normal(kt, (num_cams, 3))).astype(jnp.float32)
        self._planes_cache = None
        # TODO(synk): local_dir buffer / pose_graph / get_* helpers are unused by
        # forward(); omitted.

    def _pose_planes(self):
        # One kernel launch per parameter set; forward() just indexes it.
        if self._planes_cache is None:
            self._planes_cache = make_c2w_planes(self.r, self.t)
        return self._planes_cache

    def set_params(self, r=None, t=None):
        if r is not None:
            self.r = jnp.asarray(r, jnp.float32)
        if t is not None:
            self.t = jnp.asarray(t, jnp.float32)
        self._planes_cache = None  # invalidate cached pose planes

    def forward(self, cam_id):
        cam_id = int(cam_id)
        planes = self._pose_planes()
        # Row-major 4x4 entries live along axis 0; no (N,4,4) transpose needed.
        return planes[:, cam_id // 128, cam_id % 128].reshape(4, 4)


# ---------------- pure numpy reference (mirrors the PyTorch code) ----------------
def _ref_forward(r_all, t_all, cam_id):
    r_all = np.array(r_all, dtype=np.float32).copy()
    t_all = np.array(t_all, dtype=np.float32).copy()
    r_all[0] = 0.0
    t_all[0] = 0.0
    r = r_all[cam_id]
    t = t_all[cam_id]
    K = np.array([[0.0, -r[2], r[1]],
                  [r[2], 0.0, -r[0]],
                  [-r[1], r[0], 0.0]], dtype=np.float32)
    n = np.linalg.norm(r) + 1e-15
    R = (np.eye(3, dtype=np.float32)
         + (np.sin(n) / n) * K
         + ((1.0 - np.cos(n)) / (n ** 2)) * (K @ K))
    top = np.concatenate([R, t[:, None]], axis=1)
    c2w = np.concatenate([top, np.array([[0, 0, 0, 1]], dtype=np.float32)], axis=0)
    return c2w


if __name__ == "__main__":
    # Small shape consistent with the module: a handful of cameras.
    num_cams = 8
    model = LearnPose(num_cams, learn_R=True, learn_t=True, cfg=None,
                      key=jax.random.PRNGKey(0))
    jax.block_until_ready(model._pose_planes())   # single kernel launch

    for cam_id in (0, 3, 7):
        c2w = jax.block_until_ready(model.forward(cam_id))
        ref = _ref_forward(model.r, model.t, cam_id)
        np.testing.assert_allclose(np.asarray(c2w), ref, rtol=1e-5, atol=1e-5)

    # Also exercise the sublane x lane mapping with cameras past lane 127.
    model2 = LearnPose(200, learn_R=True, learn_t=True, cfg=None,
                       key=jax.random.PRNGKey(0))
    jax.block_until_ready(model2._pose_planes())
    for cam_id in (0, 5, 127, 128, 150, 199):
        c2w = jax.block_until_ready(model2.forward(cam_id))
        ref = _ref_forward(model2.r, model2.t, cam_id)
        np.testing.assert_allclose(np.asarray(c2w), ref, rtol=1e-5, atol=1e-5)

    print("KERNEL_OK")
</pallas_src>

<mosaic_0001>
module attributes {stable_mosaic.version = 11 : i64} {
  func.func @_pose_kernel(%arg0: i32, %arg1: memref<3x8x128xf32, #tpu.memory_space<vmem>>, %arg2: memref<3x8x128xf32, #tpu.memory_space<vmem>>, %arg3: memref<16x8x128xf32, #tpu.memory_space<vmem>>) attributes {dimension_semantics = [#tpu.dimension_semantics<parallel>], iteration_bounds = array<i64: 1>, scalar_prefetch = 0 : i64, scratch_operands = 0 : i64, tpu.core_type = #tpu.core_type<tc>, window_params = [{transform_indices = @transform_0, window_bounds = array<i64: 3, 8, 128>}, {transform_indices = @transform_1, window_bounds = array<i64: 3, 8, 128>}, {transform_indices = @transform_2, window_bounds = array<i64: 16, 8, 128>}]} {
    %c0 = arith.constant 0 : index
    %c0_0 = arith.constant 0 : index
    %c0_1 = arith.constant 0 : index
    %0 = vector.load %arg1[%c0, %c0_0, %c0_1] : memref<3x8x128xf32, #tpu.memory_space<vmem>>, vector<1x8x128xf32>
    %1 = vector.shape_cast %0 : vector<1x8x128xf32> to vector<8x128xf32>
    %c1 = arith.constant 1 : index
    %c0_2 = arith.constant 0 : index
    %c0_3 = arith.constant 0 : index
    %2 = vector.load %arg1[%c1, %c0_2, %c0_3] : memref<3x8x128xf32, #tpu.memory_space<vmem>>, vector<1x8x128xf32>
    %3 = vector.shape_cast %2 : vector<1x8x128xf32> to vector<8x128xf32>
    %c2 = arith.constant 2 : index
    %c0_4 = arith.constant 0 : index
    %c0_5 = arith.constant 0 : index
    %4 = vector.load %arg1[%c2, %c0_4, %c0_5] : memref<3x8x128xf32, #tpu.memory_space<vmem>>, vector<1x8x128xf32>
    %5 = vector.shape_cast %4 : vector<1x8x128xf32> to vector<8x128xf32>
    %c0_6 = arith.constant 0 : index
    %c0_7 = arith.constant 0 : index
    %c0_8 = arith.constant 0 : index
    %6 = vector.load %arg2[%c0_6, %c0_7, %c0_8] : memref<3x8x128xf32, #tpu.memory_space<vmem>>, vector<1x8x128xf32>
    %7 = vector.shape_cast %6 : vector<1x8x128xf32> to vector<8x128xf32>
    %c1_9 = arith.constant 1 : index
    %c0_10 = arith.constant 0 : index
    %c0_11 = arith.constant 0 : index
    %8 = vector.load %arg2[%c1_9, %c0_10, %c0_11] : memref<3x8x128xf32, #tpu.memory_space<vmem>>, vector<1x8x128xf32>
    %9 = vector.shape_cast %8 : vector<1x8x128xf32> to vector<8x128xf32>
    %c2_12 = arith.constant 2 : index
    %c0_13 = arith.constant 0 : index
    %c0_14 = arith.constant 0 : index
    %10 = vector.load %arg2[%c2_12, %c0_13, %c0_14] : memref<3x8x128xf32, #tpu.memory_space<vmem>>, vector<1x8x128xf32>
    %11 = vector.shape_cast %10 : vector<1x8x128xf32> to vector<8x128xf32>
    %12 = arith.mulf %1, %1 : vector<8x128xf32>
    %13 = arith.mulf %3, %3 : vector<8x128xf32>
    %14 = arith.mulf %5, %5 : vector<8x128xf32>
    %15 = arith.addf %12, %13 : vector<8x128xf32>
    %16 = arith.addf %15, %14 : vector<8x128xf32>
    %17 = math.sqrt %16 : vector<8x128xf32>
    %cst = arith.constant 1.000000e-15 : f32
    %18 = vector.broadcast %cst : f32 to vector<8x128xf32>
    %19 = arith.addf %17, %18 : vector<8x128xf32>
    %cst_15 = arith.constant 1.000000e+00 : f32
    %20 = vector.broadcast %cst_15 : f32 to vector<8x128xf32>
    %21 = arith.divf %20, %19 : vector<8x128xf32>
    %22 = math.sin %19 : vector<8x128xf32>
    %23 = arith.mulf %22, %21 : vector<8x128xf32>
    %24 = math.cos %19 : vector<8x128xf32>
    %cst_16 = arith.constant 1.000000e+00 : f32
    %25 = vector.broadcast %cst_16 : f32 to vector<8x128xf32>
    %26 = arith.subf %25, %24 : vector<8x128xf32>
    %27 = arith.mulf %21, %21 : vector<8x128xf32>
    %28 = arith.mulf %26, %27 : vector<8x128xf32>
    %29 = arith.mulf %1, %3 : vector<8x128xf32>
    %30 = arith.mulf %28, %29 : vector<8x128xf32>
    %31 = arith.mulf %1, %5 : vector<8x128xf32>
    %32 = arith.mulf %28, %31 : vector<8x128xf32>
    %33 = arith.mulf %3, %5 : vector<8x128xf32>
    %34 = arith.mulf %28, %33 : vector<8x128xf32>
    %35 = arith.mulf %23, %1 : vector<8x128xf32>
    %36 = arith.mulf %23, %3 : vector<8x128xf32>
    %37 = arith.mulf %23, %5 : vector<8x128xf32>
    %38 = arith.addf %13, %14 : vector<8x128xf32>
    %39 = arith.mulf %28, %38 : vector<8x128xf32>
    %cst_17 = arith.constant 1.000000e+00 : f32
    %40 = vector.broadcast %cst_17 : f32 to vector<8x128xf32>
    %41 = arith.subf %40, %39 : vector<8x128xf32>
    %c0_18 = arith.constant 0 : index
    %c0_19 = arith.constant 0 : index
    %c0_20 = arith.constant 0 : index
    %42 = vector.load %arg3[%c0_18, %c0_19, %c0_20] : memref<16x8x128xf32, #tpu.memory_space<vmem>>, vector<1x8x128xf32>
    %43 = vector.shape_cast %42 : vector<1x8x128xf32> to vector<8x128xf32>
    %44 = vector.shape_cast %41 : vector<8x128xf32> to vector<1x8x128xf32>
    tpu.vector_store %arg3[%c0_18, %c0_19, %c0_20], %44 {strides = array<i32>} : memref<16x8x128xf32, #tpu.memory_space<vmem>>, vector<1x8x128xf32>,
    %45 = arith.subf %30, %37 : vector<8x128xf32>
    %c1_21 = arith.constant 1 : index
    %c0_22 = arith.constant 0 : index
    %c0_23 = arith.constant 0 : index
    %46 = vector.load %arg3[%c1_21, %c0_22, %c0_23] : memref<16x8x128xf32, #tpu.memory_space<vmem>>, vector<1x8x128xf32>
    %47 = vector.shape_cast %46 : vector<1x8x128xf32> to vector<8x128xf32>
    %48 = vector.shape_cast %45 : vector<8x128xf32> to vector<1x8x128xf32>
    tpu.vector_store %arg3[%c1_21, %c0_22, %c0_23], %48 {strides = array<i32>} : memref<16x8x128xf32, #tpu.memory_space<vmem>>, vector<1x8x128xf32>,
    %49 = arith.addf %32, %36 : vector<8x128xf32>
    %c2_24 = arith.constant 2 : index
    %c0_25 = arith.constant 0 : index
    %c0_26 = arith.constant 0 : index
    %50 = vector.load %arg3[%c2_24, %c0_25, %c0_26] : memref<16x8x128xf32, #tpu.memory_space<vmem>>, vector<1x8x128xf32>
    %51 = vector.shape_cast %50 : vector<1x8x128xf32> to vector<8x128xf32>
    %52 = vector.shape_cast %49 : vector<8x128xf32> to vector<1x8x128xf32>
    tpu.vector_store %arg3[%c2_24, %c0_25, %c0_26], %52 {strides = array<i32>} : memref<16x8x128xf32, #tpu.memory_space<vmem>>, vector<1x8x128xf32>,
    %c3 = arith.constant 3 : index
    %c0_27 = arith.constant 0 : index
    %c0_28 = arith.constant 0 : index
    %53 = vector.load %arg3[%c3, %c0_27, %c0_28] : memref<16x8x128xf32, #tpu.memory_space<vmem>>, vector<1x8x128xf32>
    %54 = vector.shape_cast %53 : vector<1x8x128xf32> to vector<8x128xf32>
    %55 = vector.shape_cast %7 : vector<8x128xf32> to vector<1x8x128xf32>
    tpu.vector_store %arg3[%c3, %c0_27, %c0_28], %55 {strides = array<i32>} : memref<16x8x128xf32, #tpu.memory_space<vmem>>, vector<1x8x128xf32>,
    %56 = arith.addf %30, %37 : vector<8x128xf32>
    %c4 = arith.constant 4 : index
    %c0_29 = arith.constant 0 : index
    %c0_30 = arith.constant 0 : index
    %57 = vector.load %arg3[%c4, %c0_29, %c0_30] : memref<16x8x128xf32, #tpu.memory_space<vmem>>, vector<1x8x128xf32>
    %58 = vector.shape_cast %57 : vector<1x8x128xf32> to vector<8x128xf32>
    %59 = vector.shape_cast %56 : vector<8x128xf32> to vector<1x8x128xf32>
    tpu.vector_store %arg3[%c4, %c0_29, %c0_30], %59 {strides = array<i32>} : memref<16x8x128xf32, #tpu.memory_space<vmem>>, vector<1x8x128xf32>,
    %60 = arith.addf %12, %14 : vector<8x128xf32>
    %61 = arith.mulf %28, %60 : vector<8x128xf32>
    %cst_31 = arith.constant 1.000000e+00 : f32
    %62 = vector.broadcast %cst_31 : f32 to vector<8x128xf32>
    %63 = arith.subf %62, %61 : vector<8x128xf32>
    %c5 = arith.constant 5 : index
    %c0_32 = arith.constant 0 : index
    %c0_33 = arith.constant 0 : index
    %64 = vector.load %arg3[%c5, %c0_32, %c0_33] : memref<16x8x128xf32, #tpu.memory_space<vmem>>, vector<1x8x128xf32>
    %65 = vector.shape_cast %64 : vector<1x8x128xf32> to vector<8x128xf32>
    %66 = vector.shape_cast %63 : vector<8x128xf32> to vector<1x8x128xf32>
    tpu.vector_store %arg3[%c5, %c0_32, %c0_33], %66 {strides = array<i32>} : memref<16x8x128xf32, #tpu.memory_space<vmem>>, vector<1x8x128xf32>,
    %67 = arith.subf %34, %35 : vector<8x128xf32>
    %c6 = arith.constant 6 : index
    %c0_34 = arith.constant 0 : index
    %c0_35 = arith.constant 0 : index
    %68 = vector.load %arg3[%c6, %c0_34, %c0_35] : memref<16x8x128xf32, #tpu.memory_space<vmem>>, vector<1x8x128xf32>
    %69 = vector.shape_cast %68 : vector<1x8x128xf32> to vector<8x128xf32>
    %70 = vector.shape_cast %67 : vector<8x128xf32> to vector<1x8x128xf32>
    tpu.vector_store %arg3[%c6, %c0_34, %c0_35], %70 {strides = array<i32>} : memref<16x8x128xf32, #tpu.memory_space<vmem>>, vector<1x8x128xf32>,
    %c7 = arith.constant 7 : index
    %c0_36 = arith.constant 0 : index
    %c0_37 = arith.constant 0 : index
    %71 = vector.load %arg3[%c7, %c0_36, %c0_37] : memref<16x8x128xf32, #tpu.memory_space<vmem>>, vector<1x8x128xf32>
    %72 = vector.shape_cast %71 : vector<1x8x128xf32> to vector<8x128xf32>
    %73 = vector.shape_cast %9 : vector<8x128xf32> to vector<1x8x128xf32>
    tpu.vector_store %arg3[%c7, %c0_36, %c0_37], %73 {strides = array<i32>} : memref<16x8x128xf32, #tpu.memory_space<vmem>>, vector<1x8x128xf32>,
    %74 = arith.subf %32, %36 : vector<8x128xf32>
    %c8 = arith.constant 8 : index
    %c0_38 = arith.constant 0 : index
    %c0_39 = arith.constant 0 : index
    %75 = vector.load %arg3[%c8, %c0_38, %c0_39] : memref<16x8x128xf32, #tpu.memory_space<vmem>>, vector<1x8x128xf32>
    %76 = vector.shape_cast %75 : vector<1x8x128xf32> to vector<8x128xf32>
    %77 = vector.shape_cast %74 : vector<8x128xf32> to vector<1x8x128xf32>
    tpu.vector_store %arg3[%c8, %c0_38, %c0_39], %77 {strides = array<i32>} : memref<16x8x128xf32, #tpu.memory_space<vmem>>, vector<1x8x128xf32>,
    %78 = arith.addf %34, %35 : vector<8x128xf32>
    %c9 = arith.constant 9 : index
    %c0_40 = arith.constant 0 : index
    %c0_41 = arith.constant 0 : index
    %79 = vector.load %arg3[%c9, %c0_40, %c0_41] : memref<16x8x128xf32, #tpu.memory_space<vmem>>, vector<1x8x128xf32>
    %80 = vector.shape_cast %79 : vector<1x8x128xf32> to vector<8x128xf32>
    %81 = vector.shape_cast %78 : vector<8x128xf32> to vector<1x8x128xf32>
    tpu.vector_store %arg3[%c9, %c0_40, %c0_41], %81 {strides = array<i32>} : memref<16x8x128xf32, #tpu.memory_space<vmem>>, vector<1x8x128xf32>,
    %82 = arith.addf %12, %13 : vector<8x128xf32>
    %83 = arith.mulf %28, %82 : vector<8x128xf32>
    %cst_42 = arith.constant 1.000000e+00 : f32
    %84 = vector.broadcast %cst_42 : f32 to vector<8x128xf32>
    %85 = arith.subf %84, %83 : vector<8x128xf32>
    %c10 = arith.constant 10 : index
    %c0_43 = arith.constant 0 : index
    %c0_44 = arith.constant 0 : index
    %86 = vector.load %arg3[%c10, %c0_43, %c0_44] : memref<16x8x128xf32, #tpu.memory_space<vmem>>, vector<1x8x128xf32>
    %87 = vector.shape_cast %86 : vector<1x8x128xf32> to vector<8x128xf32>
    %88 = vector.shape_cast %85 : vector<8x128xf32> to vector<1x8x128xf32>
    tpu.vector_store %arg3[%c10, %c0_43, %c0_44], %88 {strides = array<i32>} : memref<16x8x128xf32, #tpu.memory_space<vmem>>, vector<1x8x128xf32>,
    %c11 = arith.constant 11 : index
    %c0_45 = arith.constant 0 : index
    %c0_46 = arith.constant 0 : index
    %89 = vector.load %arg3[%c11, %c0_45, %c0_46] : memref<16x8x128xf32, #tpu.memory_space<vmem>>, vector<1x8x128xf32>
    %90 = vector.shape_cast %89 : vector<1x8x128xf32> to vector<8x128xf32>
    %91 = vector.shape_cast %11 : vector<8x128xf32> to vector<1x8x128xf32>
    tpu.vector_store %arg3[%c11, %c0_45, %c0_46], %91 {strides = array<i32>} : memref<16x8x128xf32, #tpu.memory_space<vmem>>, vector<1x8x128xf32>,
    %cst_47 = arith.constant 0.000000e+00 : f32
    %92 = vector.broadcast %cst_47 : f32 to vector<8x128xf32>
    %c12 = arith.constant 12 : index
    %c0_48 = arith.constant 0 : index
    %c0_49 = arith.constant 0 : index
    %93 = vector.load %arg3[%c12, %c0_48, %c0_49] : memref<16x8x128xf32, #tpu.memory_space<vmem>>, vector<1x8x128xf32>
    %94 = vector.shape_cast %93 : vector<1x8x128xf32> to vector<8x128xf32>
    %95 = vector.shape_cast %92 : vector<8x128xf32> to vector<1x8x128xf32>
    tpu.vector_store %arg3[%c12, %c0_48, %c0_49], %95 {strides = array<i32>} : memref<16x8x128xf32, #tpu.memory_space<vmem>>, vector<1x8x128xf32>,
    %c13 = arith.constant 13 : index
    %c0_50 = arith.constant 0 : index
    %c0_51 = arith.constant 0 : index
    %96 = vector.load %arg3[%c13, %c0_50, %c0_51] : memref<16x8x128xf32, #tpu.memory_space<vmem>>, vector<1x8x128xf32>
    %97 = vector.shape_cast %96 : vector<1x8x128xf32> to vector<8x128xf32>
    %98 = vector.shape_cast %92 : vector<8x128xf32> to vector<1x8x128xf32>
    tpu.vector_store %arg3[%c13, %c0_50, %c0_51], %98 {strides = array<i32>} : memref<16x8x128xf32, #tpu.memory_space<vmem>>, vector<1x8x128xf32>,
    %c14 = arith.constant 14 : index
    %c0_52 = arith.constant 0 : index
    %c0_53 = arith.constant 0 : index
    %99 = vector.load %arg3[%c14, %c0_52, %c0_53] : memref<16x8x128xf32, #tpu.memory_space<vmem>>, vector<1x8x128xf32>
    %100 = vector.shape_cast %99 : vector<1x8x128xf32> to vector<8x128xf32>
    %101 = vector.shape_cast %92 : vector<8x128xf32> to vector<1x8x128xf32>
    tpu.vector_store %arg3[%c14, %c0_52, %c0_53], %101 {strides = array<i32>} : memref<16x8x128xf32, #tpu.memory_space<vmem>>, vector<1x8x128xf32>,
    %cst_54 = arith.constant 1.000000e+00 : f32
    %102 = vector.broadcast %cst_54 : f32 to vector<8x128xf32>
    %c15 = arith.constant 15 : index
    %c0_55 = arith.constant 0 : index
    %c0_56 = arith.constant 0 : index
    %103 = vector.load %arg3[%c15, %c0_55, %c0_56] : memref<16x8x128xf32, #tpu.memory_space<vmem>>, vector<1x8x128xf32>
    %104 = vector.shape_cast %103 : vector<1x8x128xf32> to vector<8x128xf32>
    %105 = vector.shape_cast %102 : vector<8x128xf32> to vector<1x8x128xf32>
    tpu.vector_store %arg3[%c15, %c0_55, %c0_56], %105 {strides = array<i32>} : memref<16x8x128xf32, #tpu.memory_space<vmem>>, vector<1x8x128xf32>,
    return
  }
  func.func @transform_0(%arg0: i32) -> (i32, i32, i32) {
    %c0_i32 = arith.constant 0 : i32
    %c0_i32_0 = arith.constant 0 : i32
    %c0_i32_1 = arith.constant 0 : i32
    return %c0_i32, %arg0, %c0_i32_0 : i32, i32, i32
  }
  func.func @transform_1(%arg0: i32) -> (i32, i32, i32) {
    %c0_i32 = arith.constant 0 : i32
    %c0_i32_0 = arith.constant 0 : i32
    %c0_i32_1 = arith.constant 0 : i32
    return %c0_i32, %arg0, %c0_i32_0 : i32, i32, i32
  }
  func.func @transform_2(%arg0: i32) -> (i32, i32, i32) {
    %c0_i32 = arith.constant 0 : i32
    %c0_i32_0 = arith.constant 0 : i32
    %c0_i32_1 = arith.constant 0 : i32
    return %c0_i32, %arg0, %c0_i32_0 : i32, i32, i32
  }
}

</mosaic_0001>

<llo_original>
// kernel: make_c2w_planes.1
$region0: #{make_c2w_planes.1}
  #allocation0 [shape = 'u32[]', space=smem, size = 0x4, offset = 0x4, fixed_abs, tag = 'smem constant byte address 0x4 - core index']
  #allocation1 [shape = 'u32[144,128]{1,0:T(1,128)}', space=vmem, size = 0x12000, scoped, tag = 'internal scratch']
  %s0 = inlined_call_operand.vmem [shape: f32[3,8,128], index: 0, kind: input, shape index: {}]
  %s1 = inlined_call_operand.vmem [shape: f32[3,8,128], index: 1, kind: input, shape index: {}]
  %s2 = inlined_call_operand.hbm [shape: f32[16,8,128], index: 2, kind: output, shape index: {}]
  %s3 = sld [smem:[#allocation0]]
  $region18: #{make_c2w_planes.1} parent=0
    _
  %s5 = ssub.s32 1, %s3
  %s6 = scalar_select 0, %s5, %s3
  $region1: #{make_c2w_planes.1} parent=0
    #allocation2 [shape = 'u8[65536]{0}', space=vmem, size = 0x10000, scoped, tag = 'output window, operand 0, single buffered']
    #allocation3 [shape = 's32[1]{0}', space=sflag, size = 0x4, scoped, tag = 'scoped memory for make_c2w_planes.1']
    %7 = vsyncpa [#allocation3], 0
    // Predicated region
    $region2: #{make_c2w_planes.1} parent=1 // pred_check
      _
    $region3: #{make_c2w_planes.1} parent=1 // pred_check_branch
      %9 = sbr.rel (0) target = $region5
    $region4: #{make_c2w_planes.1} parent=1 // pred_region
      _
    $region5: #{make_c2w_planes.1} parent=1 // pred_fallthru
      _
    // Predicated region
    $region6: #{make_c2w_planes.1} parent=1 // pred_check
      _
    $region7: #{make_c2w_planes.1} parent=1 // pred_check_branch
      %11 = sbr.rel (0) target = $region9
    $region8: #{make_c2w_planes.1} parent=1 // pred_region
      _
    $region9: #{make_c2w_planes.1} parent=1 // pred_fallthru
      _
    %v12 = vld [vmem:[%s0] sm:$0xff]
    %s13 = scalar_lea.vmem %s0, 8
    %v14 = vld [vmem:[%s13] sm:$0xff]
    %s15 = scalar_lea.vmem %s0, 16
    %v16 = vld [vmem:[%s15] sm:$0xff]
    %v17 = vld [vmem:[%s1] sm:$0xff]
    %s18 = scalar_lea.vmem %s1, 8
    %v19 = vld [vmem:[%s18] sm:$0xff]
    %s20 = scalar_lea.vmem %s1, 16
    %v21 = vld [vmem:[%s20] sm:$0xff]
    %v22 = vmul.f32 %v12, %v12
    %v23 = vmul.f32 %v14, %v14
    %v24 = vmul.f32 %v16, %v16
    %v25 = vadd.f32 %v22, %v23
    %v26 = vadd.f32 %v25, %v24
    %v27 = vrsqrt.pop %v26
    %v28 = vmul.f32 %v26, %v27
    %vm29 = vcmp.eq.f32.partialorder %v26, inf
    %v30 = vsel %vm29, %v26, %v28
    %vm31 = vcmp.eq.f32.partialorder %v26, 0.0
    %v32 = vand.u32 %v26, 2147483648
    %v33 = vsel %vm31, %v32, %v30
    %v34 = vadd.f32 %v33, 1e-15
    %v35 = vrcp.pop %v34
    %v36 = vmul.f32 1.0, %v35
    %v37 = vand.u32 2147483647, %v34
    %vm38 = vcmp.le.f32.partialorder %v37, 0.7853982
    %vm39 = vcmp.lt.s32.totalorder %v34, 0
    %v40 = vand.u32 %v34, 2139095040
    %v41 = vshrl.u32 %v40, 23
    %v42 = vsub.s32 %v41, 127
    %v43 = vand.u32 2147483647, %v34
    %v44 = vand.u32 %v43, 8388607
    %v45 = vor.u32 %v44, 8388608
    %v46 = vsub.s32 0, %v45
    %v47 = vadd.s32 %v42, 1
    %vm48 = vcmp.gt.s32.totalorder %v47, 0
    %v49 = vsel %vm48, %v47, 0
    %v50 = vshrl.u32 %v49, 5
    %v51 = vand.u32 %v49, 31
    %v52 = vsub.s32 32, %v51
    %v53 = vshrl.u32 683565275, %v52
    %v54 = vshll.u32 683565275, %v51
    %v55 = vshrl.u32 2475754826, %v52
    %v56 = vor.u32 %v54, %v55
    %v57 = vshll.u32 2475754826, %v51
    %v58 = vshrl.u32 2131351028, %v52
    %v59 = vor.u32 %v57, %v58
    %v60 = vshll.u32 2131351028, %v51
    %v61 = vshrl.u32 2102212464, %v52
    %v62 = vor.u32 %v60, %v61
    %v63 = vshll.u32 2102212464, %v51
    %v64 = vshrl.u32 920167782, %v52
    %v65 = vor.u32 %v63, %v64
    %v66 = vshll.u32 920167782, %v51
    %v67 = vshrl.u32 1326507024, %v52
    %v68 = vor.u32 %v66, %v67
    %vm69 = vcmp.lt.s32.totalorder %v50, 1
    %vm70 = vcmp.lt.s32.totalorder %v50, 2
    %vm71 = vcmp.lt.s32.totalorder %v50, 3
    %vm72 = vcmp.lt.s32.totalorder %v50, 4
    %v73 = vsel %vm69, %v53, %v56
    %v74 = vsel %vm72, %v62, 2102212464
    %v75 = vsel %vm71, %v59, %v74
    %v76 = vsel %vm70, %v73, %v75
    %v77 = vsel %vm69, %v56, %v59
    %v78 = vsel %vm72, %v65, 920167782
    %v79 = vsel %vm71, %v62, %v78
    %v80 = vsel %vm70, %v77, %v79
    %v81 = vsel %vm69, %v59, %v62
    %v82 = vsel %vm72, %v68, 1326507024
    %v83 = vsel %vm71, %v65, %v82
    %v84 = vsel %vm70, %v81, %v83
    %v85 = vshll.u32 %v45, 8
    %v86 = vmul.u32.u64.compose %v85, %v84
    %v87 = vextract.low.u32 %v86
    %v88 = vextract.high.u32 %v86
    %v89 = vmul.u32.u64.compose %v85, %v80
    %v90 = vextract.low.u32 %v89
    %v91 = vextract.high.u32 %v89
    %v92 = vmul.u32 %v85, %v76
    %v93 = vadd.s32 %v88, %v90
    %vm94 = vc.u32 %v88, %v90
    %v95 = vadd.s32 %v91, 1
    %v96 = vsel %vm94, %v95, %v91
    %v97 = vadd.s32 %v92, %v96
    %v98 = vadd.s32 %v97, 536870912
    %v99 = vshrl.u32 %v98, 30
    %v100 = vshll.u32 %v99, 30
    %v101 = vsub.s32 %v97, %v100
    %vm102 = vcmp.lt.s32.totalorder %v101, 0
    %v103 = vsub.s32 0, %v101
    %v104 = vsel %vm102, %v103, %v101
    %v105 = vclz %v104
    %v106 = vsub.s32 %v105, 2
    %vm107 = vcmp.gt.s32.totalorder 0, %v106
    %v108 = vsel %vm107, 0, %v106
    %v109 = vsub.s32 32, %v108
    %v110 = vshll.u32 %v101, %v108
    %v111 = vshrl.u32 %v93, %v109
    %v112 = vor.u32 %v110, %v111
    %v113 = vsub.s32 4294967266, %v108
    %v114 = vadd.s32 %v113, 127
    %v115 = vshll.u32 %v114, 23
    %v116 = vor.u32 4788187, %v115
    %v117 = vand.u32 2147483647, %v116
    %v119 = vcvt.s32.f32 %v112
    %v120 = vmul.f32 %v119, %v117
    %v121 = vxor.u32 %v120, 2147483648
    %v122 = vsel %vm39, %v121, %v120
    %v123 = vsub.s32 4, %v99
    %v124 = vsel %vm39, %v123, %v99
    %v125 = vsel %vm38, %v34, %v122
    %v126 = vsel %vm38, 0, %v124
    %v127 = vcosq.f32.pop %v125
    %v128 = vsinq.f32.pop %v125
    %vm129 = vweird.f32 %v34
    %v130 = vadd.s32 %v126, 3
    %v131 = vand.u32 %v130, 3
    %vm132 = vcmp.lt.s32.totalorder %v131, 2
    %vm133 = vcmp.eq.s32.totalorder %v131, 0
    %v134 = vxor.u32 %v128, 2147483648
    %v135 = vsel %vm133, %v127, %v134
    %vm136 = vcmp.eq.s32.totalorder %v131, 2
    %v137 = vxor.u32 %v127, 2147483648
    %v138 = vsel %vm136, %v137, %v128
    %v139 = vsel %vm132, %v135, %v138
    %v140 = vsel %vm129, nan, %v139
    %v141 = vmul.f32 %v140, %v36
    %v142 = vand.u32 2147483647, %v34
    %vm143 = vcmp.le.f32.partialorder %v142, 0.7853982
    %vm144 = vcmp.lt.s32.totalorder %v34, 0
    %v145 = vand.u32 %v34, 2139095040
    %v146 = vshrl.u32 %v145, 23
    %v147 = vsub.s32 %v146, 127
    %v148 = vand.u32 2147483647, %v34
    %v149 = vand.u32 %v148, 8388607
    %v150 = vor.u32 %v149, 8388608
    %v151 = vsub.s32 0, %v150
    %v152 = vadd.s32 %v147, 1
    %vm153 = vcmp.gt.s32.totalorder %v152, 0
    %v154 = vsel %vm153, %v152, 0
    %v155 = vshrl.u32 %v154, 5
    %v156 = vand.u32 %v154, 31
    %v157 = vsub.s32 32, %v156
    %v158 = vshrl.u32 683565275, %v157
    %v159 = vshll.u32 683565275, %v156
    %v160 = vshrl.u32 2475754826, %v157
    %v161 = vor.u32 %v159, %v160
    %v162 = vshll.u32 2475754826, %v156
    %v163 = vshrl.u32 2131351028, %v157
    %v164 = vor.u32 %v162, %v163
    %v165 = vshll.u32 2131351028, %v156
    %v166 = vshrl.u32 2102212464, %v157
    %v167 = vor.u32 %v165, %v166
    %v168 = vshll.u32 2102212464, %v156
    %v169 = vshrl.u32 920167782, %v157
    %v170 = vor.u32 %v168, %v169
    %v171 = vshll.u32 920167782, %v156
    %v172 = vshrl.u32 1326507024, %v157
    %v173 = vor.u32 %v171, %v172
    %vm174 = vcmp.lt.s32.totalorder %v155, 1
    %vm175 = vcmp.lt.s32.totalorder %v155, 2
    %vm176 = vcmp.lt.s32.totalorder %v155, 3
    %vm177 = vcmp.lt.s32.totalorder %v155, 4
    %v178 = vsel %vm174, %v158, %v161
    %v179 = vsel %vm177, %v167, 2102212464
    %v180 = vsel %vm176, %v164, %v179
    %v181 = vsel %vm175, %v178, %v180
    %v182 = vsel %vm174, %v161, %v164
    %v183 = vsel %vm177, %v170, 920167782
    %v184 = vsel %vm176, %v167, %v183
    %v185 = vsel %vm175, %v182, %v184
    %v186 = vsel %vm174, %v164, %v167
    %v187 = vsel %vm177, %v173, 1326507024
    %v188 = vsel %vm176, %v170, %v187
    %v189 = vsel %vm175, %v186, %v188
    %v190 = vshll.u32 %v150, 8
    %v191 = vmul.u32.u64.compose %v190, %v189
    %v192 = vextract.low.u32 %v191
    %v193 = vextract.high.u32 %v191
    %v194 = vmul.u32.u64.compose %v190, %v185
    %v195 = vextract.low.u32 %v194
    %v196 = vextract.high.u32 %v194
    %v197 = vmul.u32 %v190, %v181
    %v198 = vadd.s32 %v193, %v195
    %vm199 = vc.u32 %v193, %v195
    %v200 = vadd.s32 %v196, 1
    %v201 = vsel %vm199, %v200, %v196
    %v202 = vadd.s32 %v197, %v201
    %v203 = vadd.s32 %v202, 536870912
    %v204 = vshrl.u32 %v203, 30
    %v205 = vshll.u32 %v204, 30
    %v206 = vsub.s32 %v202, %v205
    %vm207 = vcmp.lt.s32.totalorder %v206, 0
    %v208 = vsub.s32 0, %v206
    %v209 = vsel %vm207, %v208, %v206
    %v210 = vclz %v209
    %v211 = vsub.s32 %v210, 2
    %vm212 = vcmp.gt.s32.totalorder 0, %v211
    %v213 = vsel %vm212, 0, %v211
    %v214 = vsub.s32 32, %v213
    %v215 = vshll.u32 %v206, %v213
    %v216 = vshrl.u32 %v198, %v214
    %v217 = vor.u32 %v215, %v216
    %v218 = vsub.s32 4294967266, %v213
    %v219 = vadd.s32 %v218, 127
    %v220 = vshll.u32 %v219, 23
    %v221 = vor.u32 4788187, %v220
    %v222 = vand.u32 2147483647, %v221
    %v224 = vcvt.s32.f32 %v217
    %v225 = vmul.f32 %v224, %v222
    %v226 = vxor.u32 %v225, 2147483648
    %v227 = vsel %vm144, %v226, %v225
    %v228 = vsub.s32 4, %v204
    %v229 = vsel %vm144, %v228, %v204
    %v230 = vsel %vm143, %v34, %v227
    %v231 = vsel %vm143, 0, %v229
    %v232 = vcosq.f32.pop %v230
    %v233 = vsinq.f32.pop %v230
    %vm234 = vweird.f32 %v34
    %v235 = vand.u32 %v231, 3
    %vm236 = vcmp.lt.s32.totalorder %v235, 2
    %vm237 = vcmp.eq.s32.totalorder %v235, 0
    %v238 = vxor.u32 %v233, 2147483648
    %v239 = vsel %vm237, %v232, %v238
    %vm240 = vcmp.eq.s32.totalorder %v235, 2
    %v241 = vxor.u32 %v232, 2147483648
    %v242 = vsel %vm240, %v241, %v233
    %v243 = vsel %vm236, %v239, %v242
    %v244 = vsel %vm234, nan, %v243
    %v245 = vsub.f32 1.0, %v244
    %v246 = vmul.f32 %v36, %v36
    %v247 = vmul.f32 %v245, %v246
    %v248 = vmul.f32 %v12, %v14
    %v249 = vmul.f32 %v247, %v248
    %v250 = vmul.f32 %v12, %v16
    %v251 = vmul.f32 %v247, %v250
    %v252 = vmul.f32 %v14, %v16
    %v253 = vmul.f32 %v247, %v252
    %v254 = vmul.f32 %v141, %v12
    %v255 = vmul.f32 %v141, %v14
    %v256 = vmul.f32 %v141, %v16
    %v257 = vadd.f32 %v23, %v24
    %v258 = vmul.f32 %v247, %v257
    %v259 = vsub.f32 1.0, %v258
    %260 = vst [vmem:[#allocation2] sm:$0xff] %v259
    %v261 = vsub.f32 %v249, %v256
    %s262 = scalar_lea.vmem [#allocation2], 8
    %263 = vst [vmem:[%s262] sm:$0xff] %v261
    %v264 = vadd.f32 %v251, %v255
    %s265 = scalar_lea.vmem [#allocation2], 16
    %266 = vst [vmem:[%s265] sm:$0xff] %v264
    %s267 = scalar_lea.vmem [#allocation2], 24
    %268 = vst [vmem:[%s267] sm:$0xff] %v17
    %v269 = vadd.f32 %v249, %v256
    %s270 = scalar_lea.vmem [#allocation2], 32
    %271 = vst [vmem:[%s270] sm:$0xff] %v269
    %v272 = vadd.f32 %v22, %v24
    %v273 = vmul.f32 %v247, %v272
    %v274 = vsub.f32 1.0, %v273
    %s275 = scalar_lea.vmem [#allocation2], 40
    %276 = vst [vmem:[%s275] sm:$0xff] %v274
    %v277 = vsub.f32 %v253, %v254
    %s278 = scalar_lea.vmem [#allocation2], 48
    %279 = vst [vmem:[%s278] sm:$0xff] %v277
    %s280 = scalar_lea.vmem [#allocation2], 56
    %281 = vst [vmem:[%s280] sm:$0xff] %v19
    %v282 = vsub.f32 %v251, %v255
    %s283 = scalar_lea.vmem [#allocation2], 64
    %284 = vst [vmem:[%s283] sm:$0xff] %v282
    %v285 = vadd.f32 %v253, %v254
    %s286 = scalar_lea.vmem [#allocation2], 72
    %287 = vst [vmem:[%s286] sm:$0xff] %v285
    %v288 = vmul.f32 %v247, %v25
    %v289 = vsub.f32 1.0, %v288
    %s290 = scalar_lea.vmem [#allocation2], 80
    %291 = vst [vmem:[%s290] sm:$0xff] %v289
    %s292 = scalar_lea.vmem [#allocation2], 88
    %293 = vst [vmem:[%s292] sm:$0xff] %v21
    %s294 = scalar_lea.vmem [#allocation2], 96
    %295 = vst [vmem:[%s294] sm:$0xff] 0.0
    %s296 = scalar_lea.vmem [#allocation2], 104
    %297 = vst [vmem:[%s296] sm:$0xff] 0.0
    %s298 = scalar_lea.vmem [#allocation2], 112
    %299 = vst [vmem:[%s298] sm:$0xff] 0.0
    %s300 = scalar_lea.vmem [#allocation2], 120
    %301 = vst [vmem:[%s300] sm:$0xff] 1.0
    // Predicated region
    $region10: #{make_c2w_planes.1} parent=1 // pred_check
      _
    $region11: #{make_c2w_planes.1} parent=1 // pred_check_branch
      %303 = sbr.rel (0) target = $region13
    $region12: #{make_c2w_planes.1} parent=1 // pred_region
      %s305 = ssub.s32 2048, 2048
      %306 = vsyncadd [#allocation3], %s305
      %s307 = sshll.u32 [#allocation2], 4
      %s308 = int_to_ptr.vmem [resolvable:$true] %s307
      %313 = dma.vmem_to_hbm [thread:$0]  %s308, 2048, %s2, [#allocation3], 128, 128, 8
    $region13: #{make_c2w_planes.1} parent=1 // pred_fallthru
      _
    // Predicated region
    $region14: #{make_c2w_planes.1} parent=1 // pred_check
      _
    $region15: #{make_c2w_planes.1} parent=1 // pred_check_branch
      %315 = sbr.rel (0) target = $region17
    $region16: #{make_c2w_planes.1} parent=1 // pred_region
      %316 = dma.done [#allocation3], 2048
    $region17: #{make_c2w_planes.1} parent=1 // pred_fallthru
      _
    %317 = vsyncpa [#allocation3], 1

</llo_original>
